<compile_context>
chip_gen: v5e
topology: v5e:2x2
jax: 0.10.0
libtpu: 0.0.40
codegen_flags: <defaults>
</compile_context>

<pallas_src>
import numpy as np
import jax
import jax.numpy as jnp
from jax.experimental import pallas as pl
from jax.experimental.pallas import tpu as pltpu


# ---------------------------------------------------------------------------
# Host-side (trace-time, numpy) parameter construction
# ---------------------------------------------------------------------------
def gaussian_1d(window_size: int, sigma: float) -> np.ndarray:
    x = np.arange(window_size, dtype=np.float64)
    g = np.exp(-((x - window_size // 2) ** 2) / (2.0 * sigma ** 2))
    g = g / g.sum()
    return g.astype(np.float32)


def band_conv_matrix(n: int, g: np.ndarray) -> np.ndarray:
    """A[i, j] = g[j - i + half]; (A @ v) is zero-padded 1D cross-correlation,
    identical to F.conv2d's implicit zero padding along one axis."""
    ws = g.shape[0]
    half = ws // 2
    A = np.zeros((n, n), dtype=np.float32)
    for i in range(n):
        for k in range(ws):
            j = i + k - half
            if 0 <= j < n:
                A[i, j] = g[k]
    return A


def _vmem_limit_bytes(H: int, W: int, in_itemsize: int, mm_itemsize: int) -> int:
    """Exact-ish per-buffer VMEM sum (review #8), with headroom, capped to the
    physical VMEM of the current generation."""
    need = (
        2 * 2 * H * W * in_itemsize            # x, y tiles, double-buffered
        + 2 * (H * H + W * W) * mm_itemsize    # AH, AW constants (default dbl-buf)
        + 2 * 1 * W * 4                        # output rows, double-buffered
        + 16 * H * W * 4                       # live f32 intermediates (upper bound)
    )
    try:
        info = pltpu.get_tpu_info()
        phys = int(getattr(info, "vmem_capacity_bytes", 0) or (64 << 20))
    except Exception:  # pragma: no cover - conservative fallback (v7x-sized)
        phys = 64 << 20
    cap = int(0.85 * phys)
    return int(min(max(2 * need, 8 << 20), cap))


# ---------------------------------------------------------------------------
# Pallas kernel: one (H, W) plane per grid step, fused separable conv + SSIM
# ---------------------------------------------------------------------------
def _make_ssim_plane_kernel(metric: bool, mxu_dtype):
    C1 = 0.01 ** 2
    C2 = 0.03 ** 2

    def kernel(x_ref, y_ref, ah_ref, aw_ref, out_ref):
        # Native-dtype DMA of the plane; all elementwise math in f32.
        x = x_ref[0].astype(jnp.float32)          # (H, W)
        y = y_ref[0].astype(jnp.float32)
        ah = ah_ref[...]                          # (H, H) conv matrix (H pass)
        aw = aw_ref[...]                          # (W, W) conv matrix^T (W pass)

        def conv2(z):
            # Separable Gaussian conv: H pass (left matmul), W pass (right
            # matmul).  Per-operand fusion: no concatenate, no 5-wide stack.
            t = jnp.dot(ah, z.astype(mxu_dtype),
                        preferred_element_type=jnp.float32)
            return jnp.dot(t.astype(mxu_dtype), aw,
                           preferred_element_type=jnp.float32)

        mu1 = conv2(x)
        mu2 = conv2(y)
        e_xx = conv2(x * x)
        e_yy = conv2(y * y)
        e_xy = conv2(x * y)

        mu1_sq = mu1 * mu1
        mu2_sq = mu2 * mu2
        mu1_mu2 = mu1 * mu2
        sigma1_sq = e_xx - mu1_sq
        sigma2_sq = e_yy - mu2_sq
        sigma12 = e_xy - mu1_mu2

        num = (2.0 * mu1_mu2 + C1) * (2.0 * sigma12 + C2)
        den = (mu1_sq + mu2_sq + C1) * (sigma1_sq + sigma2_sq + C2)

        # EUP approximate reciprocal + one Newton step -> ~f32 accuracy while
        # keeping the divide off the VALU (review #10).  den > 0 always
        # (C1*C2 floor), so the seed is well defined.
        inv = pl.reciprocal(den, approx=True)
        inv = inv * (2.0 - den * inv)
        ssim_map = num * inv

        if metric:
            val = jnp.clip(0.5 * (1.0 + ssim_map), 0.0, 1.0)
        else:
            val = jnp.clip(0.5 * (1.0 - ssim_map), 0.0, 1.0)

        # Reduce over H in-kernel (cuts HBM writeback to one row per plane);
        # the cross-plane reduction / mean is done outside so the grid axis
        # stays fully parallel.
        out_ref[...] = jnp.sum(val, axis=0, keepdims=True)[None]   # (1, 1, W)

    return kernel


def ssim_loss_pallas(img1: jax.Array, img2: jax.Array,
                     window_size: int = 11, metric: bool = False,
                     mxu_dtype=jnp.float32) -> jax.Array:
    """Matches SSIM(...).forward(img1, img2) with size_average=True (default)."""
    assert img1.shape == img2.shape and img1.ndim == 4
    N, C, H, W = img1.shape
    nc = N * C

    g = gaussian_1d(window_size, 1.5)
    mmdt = jnp.dtype(mxu_dtype)
    AH = jnp.asarray(band_conv_matrix(H, g), dtype=mmdt)         # H-pass (left)
    AW_r = jnp.asarray(band_conv_matrix(W, g).T, dtype=mmdt)     # W-pass (right)

    # Layout-free reshape: NCHW is already contiguous as (N*C, H, W) planes —
    # no HBM relayout pass, unlike the previous planes-on-lanes transpose.
    x = img1.reshape(nc, H, W)
    y = img2.reshape(nc, H, W)

    vmem_limit = _vmem_limit_bytes(H, W, img1.dtype.itemsize, mmdt.itemsize)

    out = pl.pallas_call(
        _make_ssim_plane_kernel(metric, mmdt),
        out_shape=jax.ShapeDtypeStruct((nc, 1, W), jnp.float32),
        grid_spec=pltpu.PrefetchScalarGridSpec(
            num_scalar_prefetch=0,
            grid=(nc,),
            in_specs=[
                pl.BlockSpec((1, H, W), lambda i: (i, 0, 0)),   # x plane
                pl.BlockSpec((1, H, W), lambda i: (i, 0, 0)),   # y plane
                pl.BlockSpec((H, H), lambda i: (0, 0)),         # AH (resident)
                pl.BlockSpec((W, W), lambda i: (0, 0)),         # AW^T (resident)
            ],
            out_specs=pl.BlockSpec((1, 1, W), lambda i: (i, 0, 0)),
        ),
        compiler_params=pltpu.CompilerParams(
            dimension_semantics=("parallel",),
            vmem_limit_bytes=vmem_limit),
    )(x, y, AH, AW_r)

    # (nc, 1, W) partial H-sums -> global mean over all N*C*H*W elements.
    return out.sum() / jnp.float32(nc * H * W)


# ---------------------------------------------------------------------------
# Pure-JAX reference (depthwise conv via lax.conv_general_dilated) for checking
# ---------------------------------------------------------------------------
def ssim_loss_ref(img1, img2, window_size=11, metric=False):
    N, C, H, W = img1.shape
    g = gaussian_1d(window_size, 1.5)
    w2d = np.outer(g, g).astype(np.float32)
    window = jnp.asarray(np.tile(w2d[None, None], (C, 1, 1, 1)))  # (C,1,ws,ws)

    def dwconv(z):
        return jax.lax.conv_general_dilated(
            z, window,
            window_strides=(1, 1),
            padding=[(window_size // 2, window_size // 2)] * 2,
            dimension_numbers=("NCHW", "OIHW", "NCHW"),
            feature_group_count=C)

    x = img1.astype(jnp.float32)
    y = img2.astype(jnp.float32)
    mu1, mu2 = dwconv(x), dwconv(y)
    mu1_sq, mu2_sq, mu1_mu2 = mu1 * mu1, mu2 * mu2, mu1 * mu2
    s1 = dwconv(x * x) - mu1_sq
    s2 = dwconv(y * y) - mu2_sq
    s12 = dwconv(x * y) - mu1_mu2
    C1, C2 = 0.01 ** 2, 0.03 ** 2
    ssim_map = ((2 * mu1_mu2 + C1) * (2 * s12 + C2)) / (
        (mu1_sq + mu2_sq + C1) * (s1 + s2 + C2))
    if metric:
        return jnp.clip(0.5 * (1.0 + ssim_map), 0.0, 1.0).mean()
    return jnp.clip(0.5 * (1.0 - ssim_map), 0.0, 1.0).mean()


if __name__ == "__main__":
    key = jax.random.PRNGKey(0)
    k1, k2, k3, k4 = jax.random.split(key, 4)

    # channels=3 matches the module default; grid length = N*C = 6 (>= 2).
    N, C, H, W = 2, 3, 16, 16
    img1 = jax.random.uniform(k1, (N, C, H, W), dtype=jnp.float32)
    img2 = jax.random.uniform(k2, (N, C, H, W), dtype=jnp.float32)

    # Exact (f32-MXU) path: tight agreement with the f32 reference.
    for metric in (False, True):
        out = jax.block_until_ready(ssim_loss_pallas(img1, img2, metric=metric))
        ref = jax.block_until_ready(ssim_loss_ref(img1, img2, metric=metric))
        np.testing.assert_allclose(np.asarray(out), np.asarray(ref),
                                   rtol=1e-4, atol=1e-5)

    # Non-square plane exercises the orientation of the two conv passes.
    a = jax.random.uniform(k3, (1, 2, 24, 40), dtype=jnp.float32)
    b = jax.random.uniform(k4, (1, 2, 24, 40), dtype=jnp.float32)
    out = jax.block_until_ready(ssim_loss_pallas(a, b))
    ref = jax.block_until_ready(ssim_loss_ref(a, b))
    np.testing.assert_allclose(np.asarray(out), np.asarray(ref),
                               rtol=1e-4, atol=1e-5)

    # bf16-MXU variant (review #1): sanity band only — the E[x^2]-mu^2
    # cancellation makes tight tolerances unattainable in bf16 (see header).
    out_bf16 = jax.block_until_ready(
        ssim_loss_pallas(img1, img2, metric=False, mxu_dtype=jnp.bfloat16))
    ref_f = float(ssim_loss_ref(img1, img2, metric=False))
    ob = float(out_bf16)
    assert np.isfinite(ob) and 0.0 <= ob <= 1.0 and abs(ob - ref_f) < 0.25

    print("KERNEL_OK")
</pallas_src>

<mosaic_0001>
module attributes {stable_mosaic.version = 11 : i64} {
  func.func @kernel(%arg0: i32, %arg1: memref<1x16x16xf32, #tpu.memory_space<vmem>>, %arg2: memref<1x16x16xf32, #tpu.memory_space<vmem>>, %arg3: memref<16x16xf32, #tpu.memory_space<vmem>>, %arg4: memref<16x16xf32, #tpu.memory_space<vmem>>, %arg5: memref<1x1x16xf32, #tpu.memory_space<vmem>>) attributes {dimension_semantics = [#tpu.dimension_semantics<parallel>], iteration_bounds = array<i64: 6>, scalar_prefetch = 0 : i64, scratch_operands = 0 : i64, tpu.core_type = #tpu.core_type<tc>, window_params = [{transform_indices = @transform_0, window_bounds = array<i64: 1, 16, 16>}, {transform_indices = @transform_1, window_bounds = array<i64: 1, 16, 16>}, {pipeline_mode = #tpu.pipeline_mode<synchronous>, transform_indices = @transform_2, window_bounds = array<i64: 16, 16>}, {pipeline_mode = #tpu.pipeline_mode<synchronous>, transform_indices = @transform_3, window_bounds = array<i64: 16, 16>}, {transform_indices = @transform_4, window_bounds = array<i64: 1, 1, 16>}]} {
    %c0 = arith.constant 0 : index
    %c0_0 = arith.constant 0 : index
    %c0_1 = arith.constant 0 : index
    %0 = vector.load %arg1[%c0, %c0_0, %c0_1] : memref<1x16x16xf32, #tpu.memory_space<vmem>>, vector<1x16x16xf32>
    %1 = vector.shape_cast %0 : vector<1x16x16xf32> to vector<16x16xf32>
    %c0_2 = arith.constant 0 : index
    %c0_3 = arith.constant 0 : index
    %c0_4 = arith.constant 0 : index
    %2 = vector.load %arg2[%c0_2, %c0_3, %c0_4] : memref<1x16x16xf32, #tpu.memory_space<vmem>>, vector<1x16x16xf32>
    %3 = vector.shape_cast %2 : vector<1x16x16xf32> to vector<16x16xf32>
    %c0_5 = arith.constant 0 : index
    %c0_6 = arith.constant 0 : index
    %4 = vector.load %arg3[%c0_5, %c0_6] : memref<16x16xf32, #tpu.memory_space<vmem>>, vector<16x16xf32>
    %c0_7 = arith.constant 0 : index
    %c0_8 = arith.constant 0 : index
    %5 = vector.load %arg4[%c0_7, %c0_8] : memref<16x16xf32, #tpu.memory_space<vmem>>, vector<16x16xf32>
    %cst = arith.constant dense<0.000000e+00> : vector<16x16xf32>
    %6 = tpu.matmul %4, %1, %cst {dimension_numbers = #tpu.dot_dimension_numbers<[1], [0], [0], [1], [0, 0, 1, 1], [], []>} : vector<16x16xf32>, vector<16x16xf32>, vector<16x16xf32> -> vector<16x16xf32>
    %cst_9 = arith.constant dense<0.000000e+00> : vector<16x16xf32>
    %7 = tpu.matmul %6, %5, %cst_9 {dimension_numbers = #tpu.dot_dimension_numbers<[1], [0], [0], [1], [0, 0, 1, 1], [], []>} : vector<16x16xf32>, vector<16x16xf32>, vector<16x16xf32> -> vector<16x16xf32>
    %cst_10 = arith.constant dense<0.000000e+00> : vector<16x16xf32>
    %8 = tpu.matmul %4, %3, %cst_10 {dimension_numbers = #tpu.dot_dimension_numbers<[1], [0], [0], [1], [0, 0, 1, 1], [], []>} : vector<16x16xf32>, vector<16x16xf32>, vector<16x16xf32> -> vector<16x16xf32>
    %cst_11 = arith.constant dense<0.000000e+00> : vector<16x16xf32>
    %9 = tpu.matmul %8, %5, %cst_11 {dimension_numbers = #tpu.dot_dimension_numbers<[1], [0], [0], [1], [0, 0, 1, 1], [], []>} : vector<16x16xf32>, vector<16x16xf32>, vector<16x16xf32> -> vector<16x16xf32>
    %10 = arith.mulf %1, %1 : vector<16x16xf32>
    %cst_12 = arith.constant dense<0.000000e+00> : vector<16x16xf32>
    %11 = tpu.matmul %4, %10, %cst_12 {dimension_numbers = #tpu.dot_dimension_numbers<[1], [0], [0], [1], [0, 0, 1, 1], [], []>} : vector<16x16xf32>, vector<16x16xf32>, vector<16x16xf32> -> vector<16x16xf32>
    %cst_13 = arith.constant dense<0.000000e+00> : vector<16x16xf32>
    %12 = tpu.matmul %11, %5, %cst_13 {dimension_numbers = #tpu.dot_dimension_numbers<[1], [0], [0], [1], [0, 0, 1, 1], [], []>} : vector<16x16xf32>, vector<16x16xf32>, vector<16x16xf32> -> vector<16x16xf32>
    %13 = arith.mulf %3, %3 : vector<16x16xf32>
    %cst_14 = arith.constant dense<0.000000e+00> : vector<16x16xf32>
    %14 = tpu.matmul %4, %13, %cst_14 {dimension_numbers = #tpu.dot_dimension_numbers<[1], [0], [0], [1], [0, 0, 1, 1], [], []>} : vector<16x16xf32>, vector<16x16xf32>, vector<16x16xf32> -> vector<16x16xf32>
    %cst_15 = arith.constant dense<0.000000e+00> : vector<16x16xf32>
    %15 = tpu.matmul %14, %5, %cst_15 {dimension_numbers = #tpu.dot_dimension_numbers<[1], [0], [0], [1], [0, 0, 1, 1], [], []>} : vector<16x16xf32>, vector<16x16xf32>, vector<16x16xf32> -> vector<16x16xf32>
    %16 = arith.mulf %1, %3 : vector<16x16xf32>
    %cst_16 = arith.constant dense<0.000000e+00> : vector<16x16xf32>
    %17 = tpu.matmul %4, %16, %cst_16 {dimension_numbers = #tpu.dot_dimension_numbers<[1], [0], [0], [1], [0, 0, 1, 1], [], []>} : vector<16x16xf32>, vector<16x16xf32>, vector<16x16xf32> -> vector<16x16xf32>
    %cst_17 = arith.constant dense<0.000000e+00> : vector<16x16xf32>
    %18 = tpu.matmul %17, %5, %cst_17 {dimension_numbers = #tpu.dot_dimension_numbers<[1], [0], [0], [1], [0, 0, 1, 1], [], []>} : vector<16x16xf32>, vector<16x16xf32>, vector<16x16xf32> -> vector<16x16xf32>
    %19 = arith.mulf %7, %7 : vector<16x16xf32>
    %20 = arith.mulf %9, %9 : vector<16x16xf32>
    %21 = arith.mulf %7, %9 : vector<16x16xf32>
    %22 = arith.subf %12, %19 : vector<16x16xf32>
    %23 = arith.subf %15, %20 : vector<16x16xf32>
    %24 = arith.subf %18, %21 : vector<16x16xf32>
    %cst_18 = arith.constant 2.000000e+00 : f32
    %25 = vector.broadcast %cst_18 : f32 to vector<16x16xf32>
    %26 = arith.mulf %25, %21 : vector<16x16xf32>
    %cst_19 = arith.constant 9.99999974E-5 : f32
    %27 = vector.broadcast %cst_19 : f32 to vector<16x16xf32>
    %28 = arith.addf %26, %27 : vector<16x16xf32>
    %cst_20 = arith.constant 2.000000e+00 : f32
    %29 = vector.broadcast %cst_20 : f32 to vector<16x16xf32>
    %30 = arith.mulf %29, %24 : vector<16x16xf32>
    %cst_21 = arith.constant 8.99999984E-4 : f32
    %31 = vector.broadcast %cst_21 : f32 to vector<16x16xf32>
    %32 = arith.addf %30, %31 : vector<16x16xf32>
    %33 = arith.mulf %28, %32 : vector<16x16xf32>
    %34 = arith.addf %19, %20 : vector<16x16xf32>
    %cst_22 = arith.constant 9.99999974E-5 : f32
    %35 = vector.broadcast %cst_22 : f32 to vector<16x16xf32>
    %36 = arith.addf %34, %35 : vector<16x16xf32>
    %37 = arith.addf %22, %23 : vector<16x16xf32>
    %cst_23 = arith.constant 8.99999984E-4 : f32
    %38 = vector.broadcast %cst_23 : f32 to vector<16x16xf32>
    %39 = arith.addf %37, %38 : vector<16x16xf32>
    %40 = arith.mulf %36, %39 : vector<16x16xf32>
    %41 = tpu.reciprocal %40 {approx = true} : vector<16x16xf32> -> vector<16x16xf32>
    %42 = arith.mulf %40, %41 : vector<16x16xf32>
    %cst_24 = arith.constant 2.000000e+00 : f32
    %43 = vector.broadcast %cst_24 : f32 to vector<16x16xf32>
    %44 = arith.subf %43, %42 : vector<16x16xf32>
    %45 = arith.mulf %41, %44 : vector<16x16xf32>
    %46 = arith.mulf %33, %45 : vector<16x16xf32>
    %cst_25 = arith.constant 1.000000e+00 : f32
    %47 = vector.broadcast %cst_25 : f32 to vector<16x16xf32>
    %48 = arith.subf %47, %46 : vector<16x16xf32>
    %cst_26 = arith.constant 5.000000e-01 : f32
    %49 = vector.broadcast %cst_26 : f32 to vector<16x16xf32>
    %50 = arith.mulf %49, %48 : vector<16x16xf32>
    %cst_27 = arith.constant 0.000000e+00 : f32
    %cst_28 = arith.constant 1.000000e+00 : f32
    %51 = vector.broadcast %cst_27 : f32 to vector<16x16xf32>
    %52 = arith.maximumf %51, %50 : vector<16x16xf32>
    %53 = vector.broadcast %cst_28 : f32 to vector<16x16xf32>
    %54 = arith.minimumf %53, %52 : vector<16x16xf32>
    %cst_29 = arith.constant dense<0.000000e+00> : vector<16xf32>
    %55 = vector.multi_reduction <add>, %54, %cst_29 [0] : vector<16x16xf32> to vector<16xf32>
    %56 = vector.shape_cast %55 : vector<16xf32> to vector<1x16xf32>
    %57 = vector.shape_cast %56 : vector<1x16xf32> to vector<1x1x16xf32>
    %c0_30 = arith.constant 0 : index
    %c0_31 = arith.constant 0 : index
    %c0_32 = arith.constant 0 : index
    %58 = vector.load %arg5[%c0_30, %c0_31, %c0_32] : memref<1x1x16xf32, #tpu.memory_space<vmem>>, vector<1x1x16xf32>
    tpu.vector_store %arg5[%c0_30, %c0_31, %c0_32], %57 {strides = array<i32>} : memref<1x1x16xf32, #tpu.memory_space<vmem>>, vector<1x1x16xf32>,
    return
  }
  func.func @transform_0(%arg0: i32) -> (i32, i32, i32) {
    %c0_i32 = arith.constant 0 : i32
    %c0_i32_0 = arith.constant 0 : i32
    %c0_i32_1 = arith.constant 0 : i32
    return %arg0, %c0_i32, %c0_i32_0 : i32, i32, i32
  }
  func.func @transform_1(%arg0: i32) -> (i32, i32, i32) {
    %c0_i32 = arith.constant 0 : i32
    %c0_i32_0 = arith.constant 0 : i32
    %c0_i32_1 = arith.constant 0 : i32
    return %arg0, %c0_i32, %c0_i32_0 : i32, i32, i32
  }
  func.func @transform_2(%arg0: i32) -> (i32, i32) {
    %c0_i32 = arith.constant 0 : i32
    %c0_i32_0 = arith.constant 0 : i32
    %c0_i32_1 = arith.constant 0 : i32
    return %c0_i32, %c0_i32_0 : i32, i32
  }
  func.func @transform_3(%arg0: i32) -> (i32, i32) {
    %c0_i32 = arith.constant 0 : i32
    %c0_i32_0 = arith.constant 0 : i32
    %c0_i32_1 = arith.constant 0 : i32
    return %c0_i32, %c0_i32_0 : i32, i32
  }
  func.func @transform_4(%arg0: i32) -> (i32, i32, i32) {
    %c0_i32 = arith.constant 0 : i32
    %c0_i32_0 = arith.constant 0 : i32
    %c0_i32_1 = arith.constant 0 : i32
    return %arg0, %c0_i32, %c0_i32_0 : i32, i32, i32
  }
}

</mosaic_0001>

<llo_original>
// kernel: tpu_custom_call.1
$region0: #{tpu_custom_call.1}
  #allocation0 [shape = 'u32[]', space=smem, size = 0x4, offset = 0x4, fixed_abs, tag = 'smem constant byte address 0x4 - core index']
  #allocation1 [shape = 'u32[72,128]{1,0:T(1,128)}', space=vmem, size = 0x9000, scoped, tag = 'internal scratch']
  %s0 = inlined_call_operand.hbm [shape: f32[6,16,16], index: 0, kind: input, shape index: {}]
  %s1 = inlined_call_operand.hbm [shape: f32[6,16,16], index: 1, kind: input, shape index: {}]
  %s2 = inlined_call_operand.hbm [shape: f32[16,16], index: 2, kind: input, shape index: {}]
  %s3 = inlined_call_operand.hbm [shape: f32[16,16], index: 3, kind: input, shape index: {}]
  %s4 = inlined_call_operand.hbm [shape: f32[6,1,16], index: 4, kind: output, shape index: {}]
  %s5 = sld [smem:[#allocation0]]
  $region65: #{tpu_custom_call.1} parent=0
    _
  %s7 = ssub.s32 1, %s5
  %s8 = scalar_select 0, %s7, %s5
  $region1: #{tpu_custom_call.1} parent=0
    #allocation2 [shape = 'u8[16384]{0}', space=vmem, size = 0x4000, scoped, tag = 'input window, operand 0']
    #allocation3 [shape = 's32[2]{0}', space=sflag, size = 0x8, scoped, tag = 'scoped memory for tpu_custom_call.1']
    #allocation4 [shape = 's32[2]{0}', space=sflag, size = 0x8, scoped, tag = 'scoped memory for tpu_custom_call.1']
    #allocation5 [shape = 'u8[16384]{0}', space=vmem, size = 0x4000, scoped, tag = 'input window, operand 1']
    #allocation6 [shape = 's32[2]{0}', space=sflag, size = 0x8, scoped, tag = 'scoped memory for tpu_custom_call.1']
    #allocation7 [shape = 'u8[8192]{0}', space=vmem, size = 0x2000, scoped, tag = 'input window, operand 2, single buffered']
    #allocation8 [shape = 'u8[8192]{0}', space=vmem, size = 0x2000, scoped, tag = 'input window, operand 3, single buffered']
    #allocation9 [shape = 's32[1]{0}', space=sflag, size = 0x4, scoped, tag = 'scoped memory for tpu_custom_call.1']
    #allocation10 [shape = 'u8[1024]{0}', space=vmem, size = 0x400, scoped, tag = 'output window, operand 0']
    %9 = vsyncpa [#allocation3], 0
    %s10 = scalar_lea.sflag [#allocation3], 1
    %11 = vsyncpa %s10, 0
    %12 = vsyncpa [#allocation6], 0
    %s13 = scalar_lea.sflag [#allocation6], 1
    %14 = vsyncpa %s13, 0
    %15 = vsyncpa [#allocation9], 0
    %16 = vsyncpa [#allocation4], 0
    %s17 = scalar_lea.sflag [#allocation4], 1
    %18 = vsyncpa %s17, 0
    loop: start=0, step=1, limit=8
    $region2: #{tpu_custom_call.1} parent=1 // loop_pre_header
      _
    $region3: #{tpu_custom_call.1} parent=1 // loop_header
      %s20 = sphi 0, %s24
      %p21 = scmp.ge.s32.totalorder %s20, 8
      %s30 = sphi 0, %s32
      %s33 = sphi 0, %s30
      %s34 = sphi 0, %s33
      %s50 = sphi 0, %s34
      %s56 = sphi 0, %s58
      %s59 = sphi 0, %s56
      %s60 = sphi 0, %s59
      %s76 = sphi 0, %s60
      %s80 = sphi 0, %s80
      %s82 = sphi 0, %s80
      %s83 = sphi 0, %s82
      %s97 = sphi 0, %s83
      %s101 = sphi 0, %s101
      %s103 = sphi 0, %s101
      %s104 = sphi 0, %s103
      %s118 = sphi 0, %s104
      %s124 = sphi 0, %s126
      %s127 = sphi 0, %s124
      %s128 = sphi 0, %s127
      %s144 = sphi 0, %s128
    $region4: #{tpu_custom_call.1} parent=1 // loop_header_branch
      %23 = sbr.rel (%p21) target = $region8
    $region5: #{tpu_custom_call.1} parent=1 // loop_body
      %s25 = ssub.s32 %s20, 1
      %s26 = ssub.s32 %s20, 2
      %s27 = sadd.s32 %s20, 1
      %s28 = ssub.s32 %s20, %s27
      %p29 = scmp.eq.s32.totalorder %s28, 0
      %s31 = sadd.s32 %s30, 1
      %s32 = scalar_select %p29, %s30, %s31
      %p35 = pneg %p29
      %p36 = scmp.eq.s32.totalorder %s20, 5
      %p37 = por %p35, %p36
      %p38 = scmp.ne.s32.totalorder %s30, %s33
      %p39 = scmp.eq.s32.totalorder %s20, 0
      %p40 = por %p38, %p39
      %p41 = scmp.ne.s32.totalorder %s30, %s33
      %p42 = scmp.eq.s32.totalorder %s25, 5
      %p43 = por %p41, %p42
      %p44 = scmp.ne.s32.totalorder %s33, %s34
      %p45 = scmp.eq.s32.totalorder %s25, 0
      %p46 = por %p44, %p45
      %p47 = scmp.ne.s32.totalorder %s33, %s34
      %p48 = scmp.eq.s32.totalorder %s26, 5
      %p49 = por %p47, %p48
      %p51 = scmp.ne.s32.totalorder %s34, %s50
      %p52 = scmp.eq.s32.totalorder %s26, 0
      %p53 = por %p51, %p52
      %s54 = ssub.s32 %s20, %s27
      %p55 = scmp.eq.s32.totalorder %s54, 0
      %s57 = sadd.s32 %s56, 1
      %s58 = scalar_select %p55, %s56, %s57
      %p61 = pneg %p55
      %p62 = scmp.eq.s32.totalorder %s20, 5
      %p63 = por %p61, %p62
      %p64 = scmp.ne.s32.totalorder %s56, %s59
      %p65 = scmp.eq.s32.totalorder %s20, 0
      %p66 = por %p64, %p65
      %p67 = scmp.ne.s32.totalorder %s56, %s59
      %p68 = scmp.eq.s32.totalorder %s25, 5
      %p69 = por %p67, %p68
      %p70 = scmp.ne.s32.totalorder %s59, %s60
      %p71 = scmp.eq.s32.totalorder %s25, 0
      %p72 = por %p70, %p71
      %p73 = scmp.ne.s32.totalorder %s59, %s60
      %p74 = scmp.eq.s32.totalorder %s26, 5
      %p75 = por %p73, %p74
      %p77 = scmp.ne.s32.totalorder %s60, %s76
      %p78 = scmp.eq.s32.totalorder %s26, 0
      %p79 = por %p77, %p78
      %s81 = sadd.s32 %s80, 1
      %p84 = scmp.eq.s32.totalorder %s20, 5
      %p85 = scmp.ne.s32.totalorder %s80, %s82
      %p86 = scmp.eq.s32.totalorder %s20, 0
      %p87 = por %p85, %p86
      %p88 = scmp.ne.s32.totalorder %s80, %s82
      %p89 = scmp.eq.s32.totalorder %s25, 5
      %p90 = por %p88, %p89
      %p91 = scmp.ne.s32.totalorder %s82, %s83
      %p92 = scmp.eq.s32.totalorder %s25, 0
      %p93 = por %p91, %p92
      %p94 = scmp.ne.s32.totalorder %s82, %s83
      %p95 = scmp.eq.s32.totalorder %s26, 5
      %p96 = por %p94, %p95
      %p98 = scmp.ne.s32.totalorder %s83, %s97
      %p99 = scmp.eq.s32.totalorder %s26, 0
      %p100 = por %p98, %p99
      %s102 = sadd.s32 %s101, 1
      %p105 = scmp.eq.s32.totalorder %s20, 5
      %p106 = scmp.ne.s32.totalorder %s101, %s103
      %p107 = scmp.eq.s32.totalorder %s20, 0
      %p108 = por %p106, %p107
      %p109 = scmp.ne.s32.totalorder %s101, %s103
      %p110 = scmp.eq.s32.totalorder %s25, 5
      %p111 = por %p109, %p110
      %p112 = scmp.ne.s32.totalorder %s103, %s104
      %p113 = scmp.eq.s32.totalorder %s25, 0
      %p114 = por %p112, %p113
      %p115 = scmp.ne.s32.totalorder %s103, %s104
      %p116 = scmp.eq.s32.totalorder %s26, 5
      %p117 = por %p115, %p116
      %p119 = scmp.ne.s32.totalorder %s104, %s118
      %p120 = scmp.eq.s32.totalorder %s26, 0
      %p121 = por %p119, %p120
      %s122 = ssub.s32 %s20, %s27
      %p123 = scmp.eq.s32.totalorder %s122, 0
      %s125 = sadd.s32 %s124, 1
      %s126 = scalar_select %p123, %s124, %s125
      %p129 = pneg %p123
      %p130 = scmp.eq.s32.totalorder %s20, 5
      %p131 = por %p129, %p130
      %p132 = scmp.ne.s32.totalorder %s124, %s127
      %p133 = scmp.eq.s32.totalorder %s20, 0
      %p134 = por %p132, %p133
      %p135 = scmp.ne.s32.totalorder %s124, %s127
      %p136 = scmp.eq.s32.totalorder %s25, 5
      %p137 = por %p135, %p136
      %p138 = scmp.ne.s32.totalorder %s127, %s128
      %p139 = scmp.eq.s32.totalorder %s25, 0
      %p140 = por %p138, %p139
      %p141 = scmp.ne.s32.totalorder %s127, %s128
      %p142 = scmp.eq.s32.totalorder %s26, 5
      %p143 = por %p141, %p142
      %p145 = scmp.ne.s32.totalorder %s128, %s144
      %p146 = scmp.eq.s32.totalorder %s26, 0
      %p147 = por %p145, %p146
      %p148 = scmp.le.s32.totalorder 1, %s20
      %p149 = scmp.lt.s32.totalorder %s20, 7
      %p150 = pnand %p148, %p149
      %p151 = pneg %p150
      // Predicated region
      $region9: #{tpu_custom_call.1} parent=5 // pred_check
        _
      $region10: #{tpu_custom_call.1} parent=5 // pred_check_branch
        %153 = sbr.rel (%p150) target = $region12
      $region11: #{tpu_custom_call.1} parent=5 // pred_region
        %s154 = ssub.s32 %s20, 1
        // Predicated region
        $region13: #{tpu_custom_call.1} parent=11 // pred_check
          %p155 = pneg %p93
        $region14: #{tpu_custom_call.1} parent=11 // pred_check_branch
          %157 = sbr.rel (%p155) target = $region16
        $region15: #{tpu_custom_call.1} parent=11 // pred_region
          %159 = vsyncadd [#allocation6], 0
          %s160 = sshll.u32 %s2, 4
          %s161 = int_to_ptr.hbm [resolvable:$true] %s160
          %s162 = sshll.u32 [#allocation7], 4
          %s163 = int_to_ptr.vmem [resolvable:$true] %s162
          %168 = dma.hbm_to_vmem [thread:$0]  %s161, 256, %s163, [#allocation6], 128, 128, 8
        $region16: #{tpu_custom_call.1} parent=11 // pred_fallthru
          _
        // Predicated region
        $region17: #{tpu_custom_call.1} parent=11 // pred_check
          %p169 = pneg %p114
        $region18: #{tpu_custom_call.1} parent=11 // pred_check_branch
          %171 = sbr.rel (%p169) target = $region20
        $region19: #{tpu_custom_call.1} parent=11 // pred_region
          %173 = vsyncadd [#allocation9], 0
          %s174 = sshll.u32 %s3, 4
          %s175 = int_to_ptr.hbm [resolvable:$true] %s174
          %s176 = sshll.u32 [#allocation8], 4
          %s177 = int_to_ptr.vmem [resolvable:$true] %s176
          %182 = dma.hbm_to_vmem [thread:$0]  %s175, 256, %s177, [#allocation9], 128, 128, 8
        $region20: #{tpu_custom_call.1} parent=11 // pred_fallthru
          _
      $region12: #{tpu_custom_call.1} parent=5 // pred_fallthru
        _
      %p183 = scmp.lt.s32.totalorder %s20, 6
      // Predicated region
      $region21: #{tpu_custom_call.1} parent=5 // pred_check
        %p184 = pneg %p183
      $region22: #{tpu_custom_call.1} parent=5 // pred_check_branch
        %186 = sbr.rel (%p184) target = $region24
      $region23: #{tpu_custom_call.1} parent=5 // pred_region
        // Predicated region
        $region25: #{tpu_custom_call.1} parent=23 // pred_check
          %p187 = pneg %p40
        $region26: #{tpu_custom_call.1} parent=23 // pred_check_branch
          %189 = sbr.rel (%p187) target = $region28
        $region27: #{tpu_custom_call.1} parent=23 // pred_region
          %s190 = sand.u32 %s30, 1
          %s191 = scalar_lea.sflag [#allocation3], %s190
          %s192 = sand.u32 %s30, 1
          %s193 = smul.addr %s192, 16
          %s194 = scalar_lea.vmem [#allocation2], %s193
          %196 = vsyncadd %s191, 0
          %s197 = smul.addr %s20, 2
          %s198 = smul.addr %s197, 8
          %s199 = scalar_lea.hbm %s0, %s198
          %s200 = sshll.u32 %s199, 4
          %s201 = int_to_ptr.hbm [resolvable:$true] %s200
          %s202 = sshll.u32 %s194, 4
          %s203 = int_to_ptr.vmem [resolvable:$true] %s202
          %208 = dma.hbm_to_vmem [thread:$0]  %s201, 256, %s203, %s191, 128, 128, 8
        $region28: #{tpu_custom_call.1} parent=23 // pred_fallthru
          _
        // Predicated region
        $region29: #{tpu_custom_call.1} parent=23 // pred_check
          %p209 = pneg %p66
        $region30: #{tpu_custom_call.1} parent=23 // pred_check_branch
          %211 = sbr.rel (%p209) target = $region32
        $region31: #{tpu_custom_call.1} parent=23 // pred_region
          %s212 = sand.u32 %s20, 1
          %s213 = scalar_lea.sflag [#allocation6], %s212
          %s214 = sand.u32 %s56, 1
          %s215 = smul.addr %s214, 16
          %s216 = scalar_lea.vmem [#allocation5], %s215
          %218 = vsyncadd %s213, 0
          %s219 = smul.addr %s20, 2
          %s220 = smul.addr %s219, 8
          %s221 = scalar_lea.hbm %s1, %s220
          %s222 = sshll.u32 %s221, 4
          %s223 = int_to_ptr.hbm [resolvable:$true] %s222
          %s224 = sshll.u32 %s216, 4
          %s225 = int_to_ptr.vmem [resolvable:$true] %s224
          %230 = dma.hbm_to_vmem [thread:$0]  %s223, 256, %s225, %s213, 128, 128, 8
        $region32: #{tpu_custom_call.1} parent=23 // pred_fallthru
          _
      $region24: #{tpu_custom_call.1} parent=5 // pred_fallthru
        _
      %p231 = scmp.le.s32.totalorder 1, %s20
      %p232 = scmp.lt.s32.totalorder %s20, 7
      %p233 = pnand %p231, %p232
      %p234 = pneg %p233
      // Predicated region
      $region33: #{tpu_custom_call.1} parent=5 // pred_check
        _
      $region34: #{tpu_custom_call.1} parent=5 // pred_check_branch
        %236 = sbr.rel (%p233) target = $region36
      $region35: #{tpu_custom_call.1} parent=5 // pred_region
        %s237 = ssub.s32 %s20, 1
        %s238 = sand.u32 %s33, 1
        %s239 = scalar_lea.sflag [#allocation3], %s238
        %s240 = sand.u32 %s33, 1
        %s241 = smul.addr %s240, 16
        %s242 = scalar_lea.vmem [#allocation2], %s241
        // Predicated region
        $region37: #{tpu_custom_call.1} parent=35 // pred_check
          %p243 = pneg %p46
        $region38: #{tpu_custom_call.1} parent=35 // pred_check_branch
          %245 = sbr.rel (%p243) target = $region40
        $region39: #{tpu_custom_call.1} parent=35 // pred_region
          %247 = dma.done %s239, 256
        $region40: #{tpu_custom_call.1} parent=35 // pred_fallthru
          _
        %s248 = sand.u32 %s25, 1
        %s249 = scalar_lea.sflag [#allocation6], %s248
        %s250 = sand.u32 %s59, 1
        %s251 = smul.addr %s250, 16
        %s252 = scalar_lea.vmem [#allocation5], %s251
        // Predicated region
        $region41: #{tpu_custom_call.1} parent=35 // pred_check
          %p253 = pneg %p72
        $region42: #{tpu_custom_call.1} parent=35 // pred_check_branch
          %255 = sbr.rel (%p253) target = $region44
        $region43: #{tpu_custom_call.1} parent=35 // pred_region
          %257 = dma.done %s249, 256
        $region44: #{tpu_custom_call.1} parent=35 // pred_fallthru
          _
        // Predicated region
        $region45: #{tpu_custom_call.1} parent=35 // pred_check
          %p258 = pneg %p93
        $region46: #{tpu_custom_call.1} parent=35 // pred_check_branch
          %260 = sbr.rel (%p258) target = $region48
        $region47: #{tpu_custom_call.1} parent=35 // pred_region
          %262 = dma.done [#allocation6], 256
        $region48: #{tpu_custom_call.1} parent=35 // pred_fallthru
          _
        // Predicated region
        $region49: #{tpu_custom_call.1} parent=35 // pred_check
          %p263 = pneg %p114
        $region50: #{tpu_custom_call.1} parent=35 // pred_check_branch
          %265 = sbr.rel (%p263) target = $region52
        $region51: #{tpu_custom_call.1} parent=35 // pred_region
          %267 = dma.done [#allocation9], 256
        $region52: #{tpu_custom_call.1} parent=35 // pred_fallthru
          _
        %s268 = sand.u32 %s33, 1
        %s269 = scalar_lea.sflag [#allocation3], %s268
        %s270 = sand.u32 %s33, 1
        %s271 = smul.addr %s270, 16
        %s272 = scalar_lea.vmem [#allocation2], %s271
        %p273 = pneg %p46
        %p274 = pneg %p43
        %s275 = sand.u32 %s25, 1
        %s276 = scalar_lea.sflag [#allocation6], %s275
        %s277 = sand.u32 %s59, 1
        %s278 = smul.addr %s277, 16
        %s279 = scalar_lea.vmem [#allocation5], %s278
        %p280 = pneg %p72
        %p281 = pneg %p69
        %p282 = pneg %p93
        %p283 = pneg %p90
        %p284 = pneg %p114
        %p285 = pneg %p111
        %p286 = pneg %p140
        %p287 = pneg %p137
        %s288 = sand.u32 %s127, 1
        %s289 = scalar_lea.sflag [#allocation4], %s288
        %s290 = sand.u32 %s127, 1
        %s291 = scalar_lea.vmem [#allocation10], %s290
        %v292 = vld [vmem:[%s242] sm:$0xff]
        %v293 = vld [vmem:[%s242 + $0x8] sm:$0xff]
        %v294 = vld [vmem:[%s252] sm:$0xff]
        %v295 = vld [vmem:[%s252 + $0x8] sm:$0xff]
        %v296 = vld [vmem:[#allocation7] sm:$0xff]
        %v297 = vld [vmem:[#allocation7 + $0x8] sm:$0xff]
        %v298 = vld [vmem:[#allocation8] sm:$0xff]
        %v299 = vld [vmem:[#allocation8 + $0x8] sm:$0xff]
        %vm300 = vcmask 130048
        %v302 = vsel %vm300, %v296, 0
        %v305 = vsel %vm300, %v297, 0
        %307 = vmatpush.msra.mxu0 0.0
        %308 = vmatpush.msra.mxu0 0.0
        %309 = vmatpush.msra.mxu0 0.0
        %310 = vmatpush.msra.mxu0 0.0
        %311 = vmatpush.msra.mxu0 0.0
        %312 = vmatpush.msra.mxu0 0.0
        %313 = vmatpush.msra.mxu0 0.0
        %314 = vmatpush.msra.mxu0 0.0
        %315 = vmatpush.msra.mxu0 0.0
        %316 = vmatpush.msra.mxu0 0.0
        %317 = vmatpush.msra.mxu0 0.0
        %318 = vmatpush.msra.mxu0 0.0
        %319 = vmatpush.msra.mxu0 0.0
        %320 = vmatpush.msra.mxu0 0.0
        %321 = vmatpush.msra.mxu0 %v293
        %322 = vmatpush.msra.mxu0 %v292
        %323 = vmatmul.f32.gmra.mxu0 %v302
        %v324 = vpop.f32.mrf.mxu0
        %v325 = vadd.f32 0.0, %v324
        %326 = vmatmul.f32.gmra.mxu0 %v305
        %v327 = vpop.f32.mrf.mxu0
        %v328 = vadd.f32 0.0, %v327
        %329 = vdwg.mxu0
        %v331 = vsel %vm300, %v325, 0
        %v334 = vsel %vm300, %v328, 0
        %336 = vmatpush.msra.mxu0 0.0
        %337 = vmatpush.msra.mxu0 0.0
        %338 = vmatpush.msra.mxu0 0.0
        %339 = vmatpush.msra.mxu0 0.0
        %340 = vmatpush.msra.mxu0 0.0
        %341 = vmatpush.msra.mxu0 0.0
        %342 = vmatpush.msra.mxu0 0.0
        %343 = vmatpush.msra.mxu0 0.0
        %344 = vmatpush.msra.mxu0 0.0
        %345 = vmatpush.msra.mxu0 0.0
        %346 = vmatpush.msra.mxu0 0.0
        %347 = vmatpush.msra.mxu0 0.0
        %348 = vmatpush.msra.mxu0 0.0
        %349 = vmatpush.msra.mxu0 0.0
        %350 = vmatpush.msra.mxu0 %v299
        %351 = vmatpush.msra.mxu0 %v298
        %352 = vmatmul.f32.gmra.mxu0 %v331
        %v353 = vpop.f32.mrf.mxu0
        %v354 = vadd.f32 0.0, %v353
        %355 = vmatmul.f32.gmra.mxu0 %v334
        %v356 = vpop.f32.mrf.mxu0
        %v357 = vadd.f32 0.0, %v356
        %358 = vdwg.mxu0
        %359 = vmatpush.msra.mxu0 0.0
        %360 = vmatpush.msra.mxu0 0.0
        %361 = vmatpush.msra.mxu0 0.0
        %362 = vmatpush.msra.mxu0 0.0
        %363 = vmatpush.msra.mxu0 0.0
        %364 = vmatpush.msra.mxu0 0.0
        %365 = vmatpush.msra.mxu0 0.0
        %366 = vmatpush.msra.mxu0 0.0
        %367 = vmatpush.msra.mxu0 0.0
        %368 = vmatpush.msra.mxu0 0.0
        %369 = vmatpush.msra.mxu0 0.0
        %370 = vmatpush.msra.mxu0 0.0
        %371 = vmatpush.msra.mxu0 0.0
        %372 = vmatpush.msra.mxu0 0.0
        %373 = vmatpush.msra.mxu0 %v295
        %374 = vmatpush.msra.mxu0 %v294
        %375 = vmatmul.f32.gmra.mxu0 %v302
        %v376 = vpop.f32.mrf.mxu0
        %v377 = vadd.f32 0.0, %v376
        %378 = vmatmul.f32.gmra.mxu0 %v305
        %v379 = vpop.f32.mrf.mxu0
        %v380 = vadd.f32 0.0, %v379
        %381 = vdwg.mxu0
        %v383 = vsel %vm300, %v377, 0
        %v386 = vsel %vm300, %v380, 0
        %388 = vmatpush.msra.mxu0 0.0
        %389 = vmatpush.msra.mxu0 0.0
        %390 = vmatpush.msra.mxu0 0.0
        %391 = vmatpush.msra.mxu0 0.0
        %392 = vmatpush.msra.mxu0 0.0
        %393 = vmatpush.msra.mxu0 0.0
        %394 = vmatpush.msra.mxu0 0.0
        %395 = vmatpush.msra.mxu0 0.0
        %396 = vmatpush.msra.mxu0 0.0
        %397 = vmatpush.msra.mxu0 0.0
        %398 = vmatpush.msra.mxu0 0.0
        %399 = vmatpush.msra.mxu0 0.0
        %400 = vmatpush.msra.mxu0 0.0
        %401 = vmatpush.msra.mxu0 0.0
        %402 = vmatpush.msra.mxu0 %v299
        %403 = vmatpush.msra.mxu0 %v298
        %404 = vmatmul.f32.gmra.mxu0 %v383
        %v405 = vpop.f32.mrf.mxu0
        %v406 = vadd.f32 0.0, %v405
        %407 = vmatmul.f32.gmra.mxu0 %v386
        %v408 = vpop.f32.mrf.mxu0
        %v409 = vadd.f32 0.0, %v408
        %410 = vdwg.mxu0
        %v411 = vmul.f32 %v292, %v292
        %v412 = vmul.f32 %v293, %v293
        %413 = vmatpush.msra.mxu0 0.0
        %414 = vmatpush.msra.mxu0 0.0
        %415 = vmatpush.msra.mxu0 0.0
        %416 = vmatpush.msra.mxu0 0.0
        %417 = vmatpush.msra.mxu0 0.0
        %418 = vmatpush.msra.mxu0 0.0
        %419 = vmatpush.msra.mxu0 0.0
        %420 = vmatpush.msra.mxu0 0.0
        %421 = vmatpush.msra.mxu0 0.0
        %422 = vmatpush.msra.mxu0 0.0
        %423 = vmatpush.msra.mxu0 0.0
        %424 = vmatpush.msra.mxu0 0.0
        %425 = vmatpush.msra.mxu0 0.0
        %426 = vmatpush.msra.mxu0 0.0
        %427 = vmatpush.msra.mxu0 %v412
        %428 = vmatpush.msra.mxu0 %v411
        %429 = vmatmul.f32.gmra.mxu0 %v302
        %v430 = vpop.f32.mrf.mxu0
        %v431 = vadd.f32 0.0, %v430
        %432 = vmatmul.f32.gmra.mxu0 %v305
        %v433 = vpop.f32.mrf.mxu0
        %v434 = vadd.f32 0.0, %v433
        %435 = vdwg.mxu0
        %v437 = vsel %vm300, %v431, 0
        %v440 = vsel %vm300, %v434, 0
        %442 = vmatpush.msra.mxu0 0.0
        %443 = vmatpush.msra.mxu0 0.0
        %444 = vmatpush.msra.mxu0 0.0
        %445 = vmatpush.msra.mxu0 0.0
        %446 = vmatpush.msra.mxu0 0.0
        %447 = vmatpush.msra.mxu0 0.0
        %448 = vmatpush.msra.mxu0 0.0
        %449 = vmatpush.msra.mxu0 0.0
        %450 = vmatpush.msra.mxu0 0.0
        %451 = vmatpush.msra.mxu0 0.0
        %452 = vmatpush.msra.mxu0 0.0
        %453 = vmatpush.msra.mxu0 0.0
        %454 = vmatpush.msra.mxu0 0.0
        %455 = vmatpush.msra.mxu0 0.0
        %456 = vmatpush.msra.mxu0 %v299
        %457 = vmatpush.msra.mxu0 %v298
        %458 = vmatmul.f32.gmra.mxu0 %v437
        %v459 = vpop.f32.mrf.mxu0
        %v460 = vadd.f32 0.0, %v459
        %461 = vmatmul.f32.gmra.mxu0 %v440
        %v462 = vpop.f32.mrf.mxu0
        %v463 = vadd.f32 0.0, %v462
        %464 = vdwg.mxu0
        %v465 = vmul.f32 %v294, %v294
        %v466 = vmul.f32 %v295, %v295
        %467 = vmatpush.msra.mxu0 0.0
        %468 = vmatpush.msra.mxu0 0.0
        %469 = vmatpush.msra.mxu0 0.0
        %470 = vmatpush.msra.mxu0 0.0
        %471 = vmatpush.msra.mxu0 0.0
        %472 = vmatpush.msra.mxu0 0.0
        %473 = vmatpush.msra.mxu0 0.0
        %474 = vmatpush.msra.mxu0 0.0
        %475 = vmatpush.msra.mxu0 0.0
        %476 = vmatpush.msra.mxu0 0.0
        %477 = vmatpush.msra.mxu0 0.0
        %478 = vmatpush.msra.mxu0 0.0
        %479 = vmatpush.msra.mxu0 0.0
        %480 = vmatpush.msra.mxu0 0.0
        %481 = vmatpush.msra.mxu0 %v466
        %482 = vmatpush.msra.mxu0 %v465
        %483 = vmatmul.f32.gmra.mxu0 %v302
        %v484 = vpop.f32.mrf.mxu0
        %v485 = vadd.f32 0.0, %v484
        %486 = vmatmul.f32.gmra.mxu0 %v305
        %v487 = vpop.f32.mrf.mxu0
        %v488 = vadd.f32 0.0, %v487
        %489 = vdwg.mxu0
        %v491 = vsel %vm300, %v485, 0
        %v494 = vsel %vm300, %v488, 0
        %496 = vmatpush.msra.mxu0 0.0
        %497 = vmatpush.msra.mxu0 0.0
        %498 = vmatpush.msra.mxu0 0.0
        %499 = vmatpush.msra.mxu0 0.0
        %500 = vmatpush.msra.mxu0 0.0
        %501 = vmatpush.msra.mxu0 0.0
        %502 = vmatpush.msra.mxu0 0.0
        %503 = vmatpush.msra.mxu0 0.0
        %504 = vmatpush.msra.mxu0 0.0
        %505 = vmatpush.msra.mxu0 0.0
        %506 = vmatpush.msra.mxu0 0.0
        %507 = vmatpush.msra.mxu0 0.0
        %508 = vmatpush.msra.mxu0 0.0
        %509 = vmatpush.msra.mxu0 0.0
        %510 = vmatpush.msra.mxu0 %v299
        %511 = vmatpush.msra.mxu0 %v298
        %512 = vmatmul.f32.gmra.mxu0 %v491
        %v513 = vpop.f32.mrf.mxu0
        %v514 = vadd.f32 0.0, %v513
        %515 = vmatmul.f32.gmra.mxu0 %v494
        %v516 = vpop.f32.mrf.mxu0
        %v517 = vadd.f32 0.0, %v516
        %518 = vdwg.mxu0
        %v519 = vmul.f32 %v292, %v294
        %v520 = vmul.f32 %v293, %v295
        %521 = vmatpush.msra.mxu0 0.0
        %522 = vmatpush.msra.mxu0 0.0
        %523 = vmatpush.msra.mxu0 0.0
        %524 = vmatpush.msra.mxu0 0.0
        %525 = vmatpush.msra.mxu0 0.0
        %526 = vmatpush.msra.mxu0 0.0
        %527 = vmatpush.msra.mxu0 0.0
        %528 = vmatpush.msra.mxu0 0.0
        %529 = vmatpush.msra.mxu0 0.0
        %530 = vmatpush.msra.mxu0 0.0
        %531 = vmatpush.msra.mxu0 0.0
        %532 = vmatpush.msra.mxu0 0.0
        %533 = vmatpush.msra.mxu0 0.0
        %534 = vmatpush.msra.mxu0 0.0
        %535 = vmatpush.msra.mxu0 %v520
        %536 = vmatpush.msra.mxu0 %v519
        %537 = vmatmul.f32.gmra.mxu0 %v302
        %v538 = vpop.f32.mrf.mxu0
        %v539 = vadd.f32 0.0, %v538
        %540 = vmatmul.f32.gmra.mxu0 %v305
        %v541 = vpop.f32.mrf.mxu0
        %v542 = vadd.f32 0.0, %v541
        %543 = vdwg.mxu0
        %v545 = vsel %vm300, %v539, 0
        %v548 = vsel %vm300, %v542, 0
        %550 = vmatpush.msra.mxu0 0.0
        %551 = vmatpush.msra.mxu0 0.0
        %552 = vmatpush.msra.mxu0 0.0
        %553 = vmatpush.msra.mxu0 0.0
        %554 = vmatpush.msra.mxu0 0.0
        %555 = vmatpush.msra.mxu0 0.0
        %556 = vmatpush.msra.mxu0 0.0
        %557 = vmatpush.msra.mxu0 0.0
        %558 = vmatpush.msra.mxu0 0.0
        %559 = vmatpush.msra.mxu0 0.0
        %560 = vmatpush.msra.mxu0 0.0
        %561 = vmatpush.msra.mxu0 0.0
        %562 = vmatpush.msra.mxu0 0.0
        %563 = vmatpush.msra.mxu0 0.0
        %564 = vmatpush.msra.mxu0 %v299
        %565 = vmatpush.msra.mxu0 %v298
        %566 = vmatmul.f32.gmra.mxu0 %v545
        %v567 = vpop.f32.mrf.mxu0
        %v568 = vadd.f32 0.0, %v567
        %569 = vmatmul.f32.gmra.mxu0 %v548
        %v570 = vpop.f32.mrf.mxu0
        %v571 = vadd.f32 0.0, %v570
        %572 = vdwg.mxu0
        %v573 = vmul.f32 %v354, %v354
        %v574 = vmul.f32 %v357, %v357
        %v575 = vmul.f32 %v406, %v406
        %v576 = vmul.f32 %v409, %v409
        %v577 = vmul.f32 %v354, %v406
        %v578 = vmul.f32 %v357, %v409
        %v579 = vsub.f32 %v460, %v573
        %v580 = vsub.f32 %v463, %v574
        %v581 = vsub.f32 %v514, %v575
        %v582 = vsub.f32 %v517, %v576
        %v583 = vsub.f32 %v568, %v577
        %v584 = vsub.f32 %v571, %v578
        %v585 = vmul.f32 %v577, 2.0
        %v586 = vmul.f32 %v578, 2.0
        %v587 = vadd.f32 %v585, 0.0001
        %v588 = vadd.f32 %v586, 0.0001
        %v589 = vmul.f32 %v583, 2.0
        %v590 = vmul.f32 %v584, 2.0
        %v591 = vadd.f32 %v589, 0.0009
        %v592 = vadd.f32 %v590, 0.0009
        %v593 = vmul.f32 %v587, %v591
        %v594 = vmul.f32 %v588, %v592
        %v595 = vadd.f32 %v573, %v575
        %v596 = vadd.f32 %v574, %v576
        %v597 = vadd.f32 %v595, 0.0001
        %v598 = vadd.f32 %v596, 0.0001
        %v599 = vadd.f32 %v579, %v581
        %v600 = vadd.f32 %v580, %v582
        %v601 = vadd.f32 %v599, 0.0009
        %v602 = vadd.f32 %v600, 0.0009
        %v603 = vmul.f32 %v597, %v601
        %v604 = vmul.f32 %v598, %v602
        %v605 = vrcp.pop %v603
        %v606 = vrcp.pop %v604
        %v607 = vmul.f32 %v603, %v605
        %v608 = vmul.f32 %v604, %v606
        %v609 = vsub.f32 2.0, %v607
        %v610 = vsub.f32 2.0, %v608
        %v611 = vmul.f32 %v605, %v609
        %v612 = vmul.f32 %v606, %v610
        %v613 = vmul.f32 %v593, %v611
        %v614 = vmul.f32 %v594, %v612
        %v615 = vsub.f32 1.0, %v613
        %v616 = vsub.f32 1.0, %v614
        %v617 = vmul.f32 %v615, 0.5
        %v618 = vmul.f32 %v616, 0.5
        %v619 = vmax.f32 %v617, 0.0
        %v620 = vmax.f32 %v618, 0.0
        %v621 = vmin.f32 %v619, 1.0
        %v622 = vmin.f32 %v620, 1.0
        %v623 = vsel %vm300, %v621, 0.0
        %v624 = vsel %vm300, %v622, 0.0
        %v625 = vadd.f32 %v623, %v624
        %v626 = vrot.slane %v625, 4
        %v627 = vadd.f32 %v625, %v626
        %v628 = vrot.slane %v627, 2
        %v629 = vadd.f32 %v627, %v628
        %v630 = vrot.slane %v629, 1
        %v631 = vadd.f32 %v629, %v630
        %vm632 = vcmask 122880
        %633 = vst.msk [vmem:[%s291] sm:$0x1] %vm632, %v631
        %s634 = sand.u32 %s127, 1
        %s635 = scalar_lea.sflag [#allocation4], %s634
        %s636 = sand.u32 %s127, 1
        %s637 = scalar_lea.vmem [#allocation10], %s636
        // Predicated region
        $region53: #{tpu_custom_call.1} parent=35 // pred_check
          %p638 = pneg %p137
        $region54: #{tpu_custom_call.1} parent=35 // pred_check_branch
          %640 = sbr.rel (%p638) target = $region56
        $region55: #{tpu_custom_call.1} parent=35 // pred_region
          %642 = vsyncadd %s635, 0
          %s643 = scalar_lea.hbm %s4, %s25
          %s645 = sshll.u32 %s637, 4
          %s646 = int_to_ptr.vmem [resolvable:$true] %s645
          %s647 = sshll.u32 %s643, 4
          %s648 = int_to_ptr.hbm [resolvable:$true] %s647
          %650 = dma.vmem_to_hbm [thread:$0]  %s646, 16, %s648, %s635
        $region56: #{tpu_custom_call.1} parent=35 // pred_fallthru
          _
      $region36: #{tpu_custom_call.1} parent=5 // pred_fallthru
        _
      %p651 = scmp.le.s32.totalorder 2, %s20
      // Predicated region
      $region57: #{tpu_custom_call.1} parent=5 // pred_check
        %p652 = pneg %p651
      $region58: #{tpu_custom_call.1} parent=5 // pred_check_branch
        %654 = sbr.rel (%p652) target = $region60
      $region59: #{tpu_custom_call.1} parent=5 // pred_region
        %s655 = ssub.s32 %s20, 2
        // Predicated region
        $region61: #{tpu_custom_call.1} parent=59 // pred_check
          %p656 = pneg %p143
        $region62: #{tpu_custom_call.1} parent=59 // pred_check_branch
          %658 = sbr.rel (%p656) target = $region64
        $region63: #{tpu_custom_call.1} parent=59 // pred_region
          %s659 = sand.u32 %s128, 1
          %s660 = scalar_lea.sflag [#allocation4], %s659
          %s661 = sand.u32 %s128, 1
          %s662 = scalar_lea.vmem [#allocation10], %s661
          %664 = dma.done %s660, 16
        $region64: #{tpu_custom_call.1} parent=59 // pred_fallthru
          _
      $region60: #{tpu_custom_call.1} parent=5 // pred_fallthru
        _
    $region6: #{tpu_custom_call.1} parent=1 // loop_footer
      %s24 = sadd.s32 1, %s20
    $region7: #{tpu_custom_call.1} parent=1 // loop_footer_branch
      %19 = sbr.rel target = $region3
    $region8: #{tpu_custom_call.1} parent=1 // loop_exit
      _
    %665 = vsyncpa [#allocation3], 1
    %s666 = scalar_lea.sflag [#allocation3], 1
    %667 = vsyncpa %s666, 1
    %668 = vsyncpa [#allocation6], 1
    %s669 = scalar_lea.sflag [#allocation6], 1
    %670 = vsyncpa %s669, 1
    %671 = vsyncpa [#allocation9], 1
    %672 = vsyncpa [#allocation4], 1
    %s673 = scalar_lea.sflag [#allocation4], 1
    %674 = vsyncpa %s673, 1

</llo_original>
